<compile_context>
chip_gen: v5e
topology: v5e:2x2
jax: 0.10.0
libtpu: 0.0.40
codegen_flags: <defaults>
</compile_context>

<pallas_src>
import jax
import jax.numpy as jnp
import numpy as np
from jax.experimental import pallas as pl
from jax.experimental.pallas import tpu as pltpu

BN_EPS = 1e-5


# --------------------------- fused Pallas kernel -----------------------------


def _make_fused_kernel(layer_cfg, nb, L):
    """layer_cfg: tuple of (Cin, Cout, K) static python ints, one per stage.

    Kernel refs: x, (w0, s0), (w1, s1), ..., out, scratch...
      x_ref  : (nb, Cin0, L)  bf16  -- NCW block, nb batch items
      w_i    : (Cout, K*Cin)  bf16  -- BN scale folded in
      s_i    : (Cout, 1)      f32   -- folded BN shift
      o_ref  : (nb, CoutLast, L) bf16
      scratch: f32 im2col slab per stage that needs one (stage 0 ingest + K>1)
    """
    n_layers = len(layer_cfg)

    def kernel(*refs):
        x_ref = refs[0]
        o_ref = refs[1 + 2 * n_layers]
        scratch = list(refs[2 + 2 * n_layers:])
        si = 0

        act = None                                    # f32 (Cout_prev, nb*L), in registers
        for i, (cin, cout, k) in enumerate(layer_cfg):
            w_ref = refs[1 + 2 * i]                   # (Cout, K*Cin) bf16
            s_ref = refs[2 + 2 * i]                   # (Cout, 1) f32
            p = (k - 1) // 2

            if i == 0:
                # Ingest: relayout the (nb, Cin0, L) HBM block to (Cin0, nb*L)
                # by storing each item at its lane offset (bottleneck has K=1).
                cols_ref = scratch[si]; si += 1
                for b in range(nb):
                    cols_ref[:, pl.ds(b * L, L)] = x_ref[b].astype(jnp.float32)
                cols = cols_ref[...].astype(jnp.bfloat16)
            elif k == 1:
                # Pointwise conv on an activation already laid out (Cin, nb*L).
                cols = act.astype(jnp.bfloat16)
            else:
                # im2col by direct tap stores: cols[t*Cin + ci, b*L + l] =
                # x[ci, b*L + l + t - p] (zero outside the item's L window).
                # Note: sublane offsets t*cin are 8-aligned for nf=8 (and still
                # correct, just masked, for e.g. nf=47).
                cols_ref = scratch[si]; si += 1
                for b in range(nb):
                    base = b * L
                    for t in range(k):
                        s = t - p
                        rows = pl.ds(t * cin, cin)
                        if s == 0:
                            cols_ref[rows, pl.ds(base, L)] = act[:, base:base + L]
                        elif s > 0:
                            cols_ref[rows, pl.ds(base, L - s)] = act[:, base + s:base + L]
                            cols_ref[rows, pl.ds(base + L - s, s)] = \
                                jnp.zeros((cin, s), jnp.float32)
                        else:
                            cols_ref[rows, pl.ds(base, -s)] = \
                                jnp.zeros((cin, -s), jnp.float32)
                            cols_ref[rows, pl.ds(base - s, L + s)] = act[:, base:base + L + s]
                cols = cols_ref[...].astype(jnp.bfloat16)

            # One deep bf16 MXU matmul per stage, f32 accumulation,
            # folded-BN shift + ReLU epilogue in f32.
            acc = jnp.dot(w_ref[...], cols, preferred_element_type=jnp.float32)
            act = jnp.maximum(acc + s_ref[...], 0.0)

        y = act.astype(o_ref.dtype)
        for b in range(nb):
            o_ref[b] = y[:, b * L:(b + 1) * L]

    return kernel


def _pick_batch_block(N, L):
    """Batch items per grid step: aim for a few-hundred-lane matmul minor dim."""
    nb = max(1, min(N, max(1, 512 // max(L, 1))))
    while N % nb:
        nb -= 1
    return nb


def _padded_block_bytes(shape, dtype):
    """VMEM bytes of a block after (sublane, lane) tile padding."""
    itemsize = jnp.dtype(dtype).itemsize
    shape = tuple(int(s) for s in shape)
    sub_mult = 8 * max(1, 4 // itemsize)          # 8 rows f32, 16 rows bf16
    lanes = -(-shape[-1] // 128) * 128
    if len(shape) == 1:
        return lanes * itemsize
    subs = -(-shape[-2] // sub_mult) * sub_mult
    lead = 1
    for s in shape[:-2]:
        lead *= s
    return lead * subs * lanes * itemsize


def waveblock_pallas(x_ncw, stage_weights, stage_shifts, layer_cfg):
    """x_ncw: (N, Cin0, L) bf16; stage_weights[i]: (Cout, K*Cin) bf16;
    stage_shifts[i]: (Cout, 1) f32.  Returns (N, CoutLast, L) bf16."""
    N, cin0, L = x_ncw.shape
    cout_last = layer_cfg[-1][1]
    nb = _pick_batch_block(N, L)

    in_specs = [pl.BlockSpec((nb, cin0, L), lambda n: (n, 0, 0))]
    block_defs = [((nb, cin0, L), x_ncw.dtype)]
    flat_in = [x_ncw]
    for (cin, cout, k), w2d, sh in zip(layer_cfg, stage_weights, stage_shifts):
        in_specs.append(pl.BlockSpec((cout, k * cin), lambda n: (0, 0)))
        in_specs.append(pl.BlockSpec((cout, 1), lambda n: (0, 0)))
        block_defs += [((cout, k * cin), w2d.dtype), ((cout, 1), sh.dtype)]
        flat_in += [w2d, sh]

    out_dtype = jnp.bfloat16
    out_block = (nb, cout_last, L)

    scratch_defs = []
    for i, (cin, cout, k) in enumerate(layer_cfg):
        if i == 0 or k > 1:
            scratch_defs.append(((k * cin, nb * L), jnp.float32))
    scratch_shapes = [pltpu.VMEM(shape, dt) for shape, dt in scratch_defs]

    # Real VMEM need: double-buffered in/out/param blocks + persistent scratch.
    vmem_need = sum(2 * _padded_block_bytes(s, d) for s, d in block_defs)
    vmem_need += 2 * _padded_block_bytes(out_block, out_dtype)
    vmem_need += sum(_padded_block_bytes(s, d) for s, d in scratch_defs)
    vmem_limit = int(min(48 * 1024 * 1024, max(4 * 1024 * 1024, 2 * vmem_need)))

    return pl.pallas_call(
        _make_fused_kernel(tuple(layer_cfg), nb, L),
        out_shape=jax.ShapeDtypeStruct((N, cout_last, L), out_dtype),
        grid=(N // nb,),
        in_specs=in_specs,
        out_specs=pl.BlockSpec(out_block, lambda n: (n, 0, 0)),
        scratch_shapes=scratch_shapes,
        compiler_params=pltpu.CompilerParams(
            dimension_semantics=("parallel",),   # batch-block axis; splits across v7x's 2 TCs when grid > 1
            vmem_limit_bytes=vmem_limit,
        ),
    )(*flat_in)


# ------------------------- WaveBlock parameterization ------------------------


def _wave_kernel_sizes(kernel_sizes):
    ks = [kernel_sizes // 2 ** i for i in range(3)]
    return [k if k % 2 != 0 else k - 1 for k in ks]


def init_waveblock_params(key, n_in, nf, kernel_sizes):
    """Deterministic synthetic parameters (shapes follow the PyTorch __init__)."""
    ks = _wave_kernel_sizes(kernel_sizes)
    layer_defs = [(n_in, nf[0], 1)]                 # bottleneck: Conv1d(n_in, nf[0], 1)
    for i in range(len(nf) - 1):
        layer_defs.append((nf[i], nf[i + 1], ks[i]))

    params = []
    for (ci, co, k) in layer_defs:
        key, kw, kb, kg, kbe, km, kv = jax.random.split(key, 7)
        fan = ci * k
        w = jax.random.normal(kw, (co, ci, k), jnp.float32) / np.sqrt(fan)   # torch OIW
        b = 0.05 * jax.random.normal(kb, (co,), jnp.float32)
        gamma = 1.0 + 0.1 * jax.random.normal(kg, (co,), jnp.float32)
        beta = 0.1 * jax.random.normal(kbe, (co,), jnp.float32)
        mean = 0.1 * jax.random.normal(km, (co,), jnp.float32)
        var = jnp.abs(jax.random.normal(kv, (co,), jnp.float32)) + 0.5
        params.append(dict(w=w, b=b, gamma=gamma, beta=beta, mean=mean, var=var))
    return params


def fold_waveblock_params(params):
    """Fold BN (inference running stats) into conv weights ONCE, outside jit."""
    layer_cfg, ws, shs = [], [], []
    for p in params:
        w, b = p["w"], p["b"]
        cout, cin, k = w.shape
        scale = p["gamma"] / jnp.sqrt(p["var"] + BN_EPS)
        shift = p["beta"] + (b - p["mean"]) * scale
        # torch OIW (Cout,Cin,K) -> (Cout,K,Cin) -> (Cout, K*Cin); fold BN scale.
        w2d = (jnp.transpose(w, (0, 2, 1)) * scale[:, None, None]).reshape(cout, k * cin)
        layer_cfg.append((cin, cout, k))
        ws.append(jnp.asarray(w2d, jnp.bfloat16))
        shs.append(jnp.asarray(shift.reshape(cout, 1), jnp.float32))
    return tuple(layer_cfg), tuple(ws), tuple(shs)


def make_waveblock_forward(folded):
    layer_cfg, ws, shs = folded

    @jax.jit
    def forward(x_ncw):
        # Native NCW in and out (no transposes); bf16 halves activation DMA bytes.
        return waveblock_pallas(x_ncw.astype(jnp.bfloat16), ws, shs, layer_cfg)

    return forward


# ----------------------------- pure-JAX reference ----------------------------


def _ref_stage(x_ncw, p):
    w, b = p["w"], p["b"]
    k = w.shape[-1]
    pad = (k - 1) // 2
    y = jax.lax.conv_general_dilated(
        x_ncw, w, window_strides=(1,), padding=[(pad, pad)],
        dimension_numbers=("NCH", "OIH", "NCH"))
    y = y + b[None, :, None]
    y = (y - p["mean"][None, :, None]) / jnp.sqrt(p["var"][None, :, None] + BN_EPS)
    y = y * p["gamma"][None, :, None] + p["beta"][None, :, None]
    return jnp.maximum(y, 0.0)


def waveblock_reference(x_ncw, params):
    x = x_ncw
    for p in params:
        x = _ref_stage(x, p)
    return x


# ----------------------------------- main -------------------------------------

if __name__ == "__main__":
    # Small shapes consistent with the module: batch=2, n_in=4, L=32,
    # nf=[8,8,8,8], kernel_sizes=7 -> per-wave kernel sizes [7, 3, 1].
    N, n_in, L = 2, 4, 32
    nf = [8, 8, 8, 8]
    kernel_sizes = 7

    key = jax.random.PRNGKey(0)
    kx, kp = jax.random.split(key)
    x = jax.random.normal(kx, (N, n_in, L), jnp.float32)   # NCW, same as PyTorch

    params = init_waveblock_params(kp, n_in, nf, kernel_sizes)
    folded = fold_waveblock_params(params)                  # BN folding done once, outside jit
    forward = make_waveblock_forward(folded)

    out = jax.block_until_ready(forward(x))
    ref = jax.block_until_ready(waveblock_reference(x, params))

    assert out.shape == (N, nf[-1], L), out.shape
    np.testing.assert_allclose(np.asarray(out, dtype=np.float32), np.asarray(ref),
                               rtol=5e-2, atol=5e-2)       # bf16 operands, f32 accumulation

    print("KERNEL_OK")
</pallas_src>

<mosaic_0001>
module attributes {stable_mosaic.version = 11 : i64} {
  func.func @kernel(%arg0: i32, %arg1: memref<2x4x32xbf16, #tpu.memory_space<vmem>>, %arg2: memref<8x4xbf16, #tpu.memory_space<vmem>>, %arg3: memref<8x1xf32, #tpu.memory_space<vmem>>, %arg4: memref<8x56xbf16, #tpu.memory_space<vmem>>, %arg5: memref<8x1xf32, #tpu.memory_space<vmem>>, %arg6: memref<8x24xbf16, #tpu.memory_space<vmem>>, %arg7: memref<8x1xf32, #tpu.memory_space<vmem>>, %arg8: memref<8x8xbf16, #tpu.memory_space<vmem>>, %arg9: memref<8x1xf32, #tpu.memory_space<vmem>>, %arg10: memref<2x8x32xbf16, #tpu.memory_space<vmem>>, %arg11: memref<4x64xf32, #tpu.memory_space<vmem>>, %arg12: memref<56x64xf32, #tpu.memory_space<vmem>>, %arg13: memref<24x64xf32, #tpu.memory_space<vmem>>) attributes {dimension_semantics = [#tpu.dimension_semantics<parallel>], iteration_bounds = array<i64: 1>, scalar_prefetch = 0 : i64, scratch_operands = 3 : i64, tpu.core_type = #tpu.core_type<tc>, window_params = [{transform_indices = @transform_0, window_bounds = array<i64: 2, 4, 32>}, {pipeline_mode = #tpu.pipeline_mode<synchronous>, transform_indices = @transform_1, window_bounds = array<i64: 8, 4>}, {pipeline_mode = #tpu.pipeline_mode<synchronous>, transform_indices = @transform_2, window_bounds = array<i64: 8, 1>}, {pipeline_mode = #tpu.pipeline_mode<synchronous>, transform_indices = @transform_3, window_bounds = array<i64: 8, 56>}, {pipeline_mode = #tpu.pipeline_mode<synchronous>, transform_indices = @transform_4, window_bounds = array<i64: 8, 1>}, {pipeline_mode = #tpu.pipeline_mode<synchronous>, transform_indices = @transform_5, window_bounds = array<i64: 8, 24>}, {pipeline_mode = #tpu.pipeline_mode<synchronous>, transform_indices = @transform_6, window_bounds = array<i64: 8, 1>}, {pipeline_mode = #tpu.pipeline_mode<synchronous>, transform_indices = @transform_7, window_bounds = array<i64: 8, 8>}, {pipeline_mode = #tpu.pipeline_mode<synchronous>, transform_indices = @transform_8, window_bounds = array<i64: 8, 1>}, {transform_indices = @transform_9, window_bounds = array<i64: 2, 8, 32>}]} {
    %c0 = arith.constant 0 : index
    %c0_0 = arith.constant 0 : index
    %c0_1 = arith.constant 0 : index
    %0 = vector.load %arg1[%c0, %c0_0, %c0_1] : memref<2x4x32xbf16, #tpu.memory_space<vmem>>, vector<1x4x32xbf16>
    %1 = vector.shape_cast %0 : vector<1x4x32xbf16> to vector<4x32xbf16>
    %2 = arith.extf %1 : vector<4x32xbf16> to vector<4x32xf32>
    %c0_2 = arith.constant 0 : index
    %c0_3 = arith.constant 0 : index
    %3 = vector.load %arg11[%c0_2, %c0_3] : memref<4x64xf32, #tpu.memory_space<vmem>>, vector<4x32xf32>
    tpu.vector_store %arg11[%c0_2, %c0_3], %2 {strides = array<i32>} : memref<4x64xf32, #tpu.memory_space<vmem>>, vector<4x32xf32>,
    %c1 = arith.constant 1 : index
    %c0_4 = arith.constant 0 : index
    %c0_5 = arith.constant 0 : index
    %4 = vector.load %arg1[%c1, %c0_4, %c0_5] : memref<2x4x32xbf16, #tpu.memory_space<vmem>>, vector<1x4x32xbf16>
    %5 = vector.shape_cast %4 : vector<1x4x32xbf16> to vector<4x32xbf16>
    %6 = arith.extf %5 : vector<4x32xbf16> to vector<4x32xf32>
    %c0_6 = arith.constant 0 : index
    %c32 = arith.constant 32 : index
    %7 = vector.load %arg11[%c0_6, %c32] : memref<4x64xf32, #tpu.memory_space<vmem>>, vector<4x32xf32>
    tpu.vector_store %arg11[%c0_6, %c32], %6 {strides = array<i32>} : memref<4x64xf32, #tpu.memory_space<vmem>>, vector<4x32xf32>,
    %c0_7 = arith.constant 0 : index
    %c0_8 = arith.constant 0 : index
    %8 = vector.load %arg11[%c0_7, %c0_8] : memref<4x64xf32, #tpu.memory_space<vmem>>, vector<4x64xf32>
    %9 = arith.truncf %8 : vector<4x64xf32> to vector<4x64xbf16>
    %c0_9 = arith.constant 0 : index
    %c0_10 = arith.constant 0 : index
    %10 = vector.load %arg2[%c0_9, %c0_10] : memref<8x4xbf16, #tpu.memory_space<vmem>>, vector<8x4xbf16>
    %cst = arith.constant dense<0.000000e+00> : vector<8x64xf32>
    %11 = tpu.matmul %10, %9, %cst {dimension_numbers = #tpu.dot_dimension_numbers<[1], [0], [0], [1], [0, 0, 1, 1], [], []>} : vector<8x4xbf16>, vector<4x64xbf16>, vector<8x64xf32> -> vector<8x64xf32>
    %c0_11 = arith.constant 0 : index
    %c0_12 = arith.constant 0 : index
    %12 = vector.load %arg3[%c0_11, %c0_12] : memref<8x1xf32, #tpu.memory_space<vmem>>, vector<8x1xf32>
    %13 = vector.broadcast %12 : vector<8x1xf32> to vector<8x64xf32>
    %14 = arith.addf %11, %13 : vector<8x64xf32>
    %cst_13 = arith.constant 0.000000e+00 : f32
    %15 = vector.broadcast %cst_13 : f32 to vector<8x64xf32>
    %16 = arith.maximumf %14, %15 : vector<8x64xf32>
    %cst_14 = arith.constant 0.000000e+00 : f32
    %17 = vector.broadcast %cst_14 : f32 to vector<8x3xf32>
    %c0_15 = arith.constant 0 : index
    %c0_16 = arith.constant 0 : index
    %18 = vector.load %arg12[%c0_15, %c0_16] : memref<56x64xf32, #tpu.memory_space<vmem>>, vector<8x3xf32>
    tpu.vector_store %arg12[%c0_15, %c0_16], %17 {strides = array<i32>} : memref<56x64xf32, #tpu.memory_space<vmem>>, vector<8x3xf32>,
    %19 = vector.extract_strided_slice %16 {offsets = [0, 0], sizes = [8, 29], strides = [1, 1]} : vector<8x64xf32> to vector<8x29xf32>
    %c0_17 = arith.constant 0 : index
    %c3 = arith.constant 3 : index
    %20 = vector.load %arg12[%c0_17, %c3] : memref<56x64xf32, #tpu.memory_space<vmem>>, vector<8x29xf32>
    tpu.vector_store %arg12[%c0_17, %c3], %19 {strides = array<i32>} : memref<56x64xf32, #tpu.memory_space<vmem>>, vector<8x29xf32>,
    %cst_18 = arith.constant 0.000000e+00 : f32
    %21 = vector.broadcast %cst_18 : f32 to vector<8x2xf32>
    %c8 = arith.constant 8 : index
    %c0_19 = arith.constant 0 : index
    %22 = vector.load %arg12[%c8, %c0_19] : memref<56x64xf32, #tpu.memory_space<vmem>>, vector<8x2xf32>
    tpu.vector_store %arg12[%c8, %c0_19], %21 {strides = array<i32>} : memref<56x64xf32, #tpu.memory_space<vmem>>, vector<8x2xf32>,
    %23 = vector.extract_strided_slice %16 {offsets = [0, 0], sizes = [8, 30], strides = [1, 1]} : vector<8x64xf32> to vector<8x30xf32>
    %c8_20 = arith.constant 8 : index
    %c2 = arith.constant 2 : index
    %24 = vector.load %arg12[%c8_20, %c2] : memref<56x64xf32, #tpu.memory_space<vmem>>, vector<8x30xf32>
    tpu.vector_store %arg12[%c8_20, %c2], %23 {strides = array<i32>} : memref<56x64xf32, #tpu.memory_space<vmem>>, vector<8x30xf32>,
    %cst_21 = arith.constant 0.000000e+00 : f32
    %25 = vector.broadcast %cst_21 : f32 to vector<8x1xf32>
    %c16 = arith.constant 16 : index
    %c0_22 = arith.constant 0 : index
    %26 = vector.load %arg12[%c16, %c0_22] : memref<56x64xf32, #tpu.memory_space<vmem>>, vector<8x1xf32>
    tpu.vector_store %arg12[%c16, %c0_22], %25 {strides = array<i32>} : memref<56x64xf32, #tpu.memory_space<vmem>>, vector<8x1xf32>,
    %27 = vector.extract_strided_slice %16 {offsets = [0, 0], sizes = [8, 31], strides = [1, 1]} : vector<8x64xf32> to vector<8x31xf32>
    %c16_23 = arith.constant 16 : index
    %c1_24 = arith.constant 1 : index
    %28 = vector.load %arg12[%c16_23, %c1_24] : memref<56x64xf32, #tpu.memory_space<vmem>>, vector<8x31xf32>
    tpu.vector_store %arg12[%c16_23, %c1_24], %27 {strides = array<i32>} : memref<56x64xf32, #tpu.memory_space<vmem>>, vector<8x31xf32>,
    %29 = vector.extract_strided_slice %16 {offsets = [0, 0], sizes = [8, 32], strides = [1, 1]} : vector<8x64xf32> to vector<8x32xf32>
    %c24 = arith.constant 24 : index
    %c0_25 = arith.constant 0 : index
    %30 = vector.load %arg12[%c24, %c0_25] : memref<56x64xf32, #tpu.memory_space<vmem>>, vector<8x32xf32>
    tpu.vector_store %arg12[%c24, %c0_25], %29 {strides = array<i32>} : memref<56x64xf32, #tpu.memory_space<vmem>>, vector<8x32xf32>,
    %31 = vector.extract_strided_slice %16 {offsets = [0, 1], sizes = [8, 31], strides = [1, 1]} : vector<8x64xf32> to vector<8x31xf32>
    %c32_26 = arith.constant 32 : index
    %c0_27 = arith.constant 0 : index
    %32 = vector.load %arg12[%c32_26, %c0_27] : memref<56x64xf32, #tpu.memory_space<vmem>>, vector<8x31xf32>
    tpu.vector_store %arg12[%c32_26, %c0_27], %31 {strides = array<i32>} : memref<56x64xf32, #tpu.memory_space<vmem>>, vector<8x31xf32>,
    %cst_28 = arith.constant 0.000000e+00 : f32
    %33 = vector.broadcast %cst_28 : f32 to vector<8x1xf32>
    %c32_29 = arith.constant 32 : index
    %c31 = arith.constant 31 : index
    %34 = vector.load %arg12[%c32_29, %c31] : memref<56x64xf32, #tpu.memory_space<vmem>>, vector<8x1xf32>
    tpu.vector_store %arg12[%c32_29, %c31], %33 {strides = array<i32>} : memref<56x64xf32, #tpu.memory_space<vmem>>, vector<8x1xf32>,
    %35 = vector.extract_strided_slice %16 {offsets = [0, 2], sizes = [8, 30], strides = [1, 1]} : vector<8x64xf32> to vector<8x30xf32>
    %c40 = arith.constant 40 : index
    %c0_30 = arith.constant 0 : index
    %36 = vector.load %arg12[%c40, %c0_30] : memref<56x64xf32, #tpu.memory_space<vmem>>, vector<8x30xf32>
    tpu.vector_store %arg12[%c40, %c0_30], %35 {strides = array<i32>} : memref<56x64xf32, #tpu.memory_space<vmem>>, vector<8x30xf32>,
    %cst_31 = arith.constant 0.000000e+00 : f32
    %37 = vector.broadcast %cst_31 : f32 to vector<8x2xf32>
    %c40_32 = arith.constant 40 : index
    %c30 = arith.constant 30 : index
    %38 = vector.load %arg12[%c40_32, %c30] : memref<56x64xf32, #tpu.memory_space<vmem>>, vector<8x2xf32>
    tpu.vector_store %arg12[%c40_32, %c30], %37 {strides = array<i32>} : memref<56x64xf32, #tpu.memory_space<vmem>>, vector<8x2xf32>,
    %39 = vector.extract_strided_slice %16 {offsets = [0, 3], sizes = [8, 29], strides = [1, 1]} : vector<8x64xf32> to vector<8x29xf32>
    %c48 = arith.constant 48 : index
    %c0_33 = arith.constant 0 : index
    %40 = vector.load %arg12[%c48, %c0_33] : memref<56x64xf32, #tpu.memory_space<vmem>>, vector<8x29xf32>
    tpu.vector_store %arg12[%c48, %c0_33], %39 {strides = array<i32>} : memref<56x64xf32, #tpu.memory_space<vmem>>, vector<8x29xf32>,
    %cst_34 = arith.constant 0.000000e+00 : f32
    %41 = vector.broadcast %cst_34 : f32 to vector<8x3xf32>
    %c48_35 = arith.constant 48 : index
    %c29 = arith.constant 29 : index
    %42 = vector.load %arg12[%c48_35, %c29] : memref<56x64xf32, #tpu.memory_space<vmem>>, vector<8x3xf32>
    tpu.vector_store %arg12[%c48_35, %c29], %41 {strides = array<i32>} : memref<56x64xf32, #tpu.memory_space<vmem>>, vector<8x3xf32>,
    %cst_36 = arith.constant 0.000000e+00 : f32
    %43 = vector.broadcast %cst_36 : f32 to vector<8x3xf32>
    %c0_37 = arith.constant 0 : index
    %c32_38 = arith.constant 32 : index
    %44 = vector.load %arg12[%c0_37, %c32_38] : memref<56x64xf32, #tpu.memory_space<vmem>>, vector<8x3xf32>
    tpu.vector_store %arg12[%c0_37, %c32_38], %43 {strides = array<i32>} : memref<56x64xf32, #tpu.memory_space<vmem>>, vector<8x3xf32>,
    %45 = vector.extract_strided_slice %16 {offsets = [0, 32], sizes = [8, 29], strides = [1, 1]} : vector<8x64xf32> to vector<8x29xf32>
    %c0_39 = arith.constant 0 : index
    %c35 = arith.constant 35 : index
    %46 = vector.load %arg12[%c0_39, %c35] : memref<56x64xf32, #tpu.memory_space<vmem>>, vector<8x29xf32>
    tpu.vector_store %arg12[%c0_39, %c35], %45 {strides = array<i32>} : memref<56x64xf32, #tpu.memory_space<vmem>>, vector<8x29xf32>,
    %cst_40 = arith.constant 0.000000e+00 : f32
    %47 = vector.broadcast %cst_40 : f32 to vector<8x2xf32>
    %c8_41 = arith.constant 8 : index
    %c32_42 = arith.constant 32 : index
    %48 = vector.load %arg12[%c8_41, %c32_42] : memref<56x64xf32, #tpu.memory_space<vmem>>, vector<8x2xf32>
    tpu.vector_store %arg12[%c8_41, %c32_42], %47 {strides = array<i32>} : memref<56x64xf32, #tpu.memory_space<vmem>>, vector<8x2xf32>,
    %49 = vector.extract_strided_slice %16 {offsets = [0, 32], sizes = [8, 30], strides = [1, 1]} : vector<8x64xf32> to vector<8x30xf32>
    %c8_43 = arith.constant 8 : index
    %c34 = arith.constant 34 : index
    %50 = vector.load %arg12[%c8_43, %c34] : memref<56x64xf32, #tpu.memory_space<vmem>>, vector<8x30xf32>
    tpu.vector_store %arg12[%c8_43, %c34], %49 {strides = array<i32>} : memref<56x64xf32, #tpu.memory_space<vmem>>, vector<8x30xf32>,
    %cst_44 = arith.constant 0.000000e+00 : f32
    %51 = vector.broadcast %cst_44 : f32 to vector<8x1xf32>
    %c16_45 = arith.constant 16 : index
    %c32_46 = arith.constant 32 : index
    %52 = vector.load %arg12[%c16_45, %c32_46] : memref<56x64xf32, #tpu.memory_space<vmem>>, vector<8x1xf32>
    tpu.vector_store %arg12[%c16_45, %c32_46], %51 {strides = array<i32>} : memref<56x64xf32, #tpu.memory_space<vmem>>, vector<8x1xf32>,
    %53 = vector.extract_strided_slice %16 {offsets = [0, 32], sizes = [8, 31], strides = [1, 1]} : vector<8x64xf32> to vector<8x31xf32>
    %c16_47 = arith.constant 16 : index
    %c33 = arith.constant 33 : index
    %54 = vector.load %arg12[%c16_47, %c33] : memref<56x64xf32, #tpu.memory_space<vmem>>, vector<8x31xf32>
    tpu.vector_store %arg12[%c16_47, %c33], %53 {strides = array<i32>} : memref<56x64xf32, #tpu.memory_space<vmem>>, vector<8x31xf32>,
    %55 = vector.extract_strided_slice %16 {offsets = [0, 32], sizes = [8, 32], strides = [1, 1]} : vector<8x64xf32> to vector<8x32xf32>
    %c24_48 = arith.constant 24 : index
    %c32_49 = arith.constant 32 : index
    %56 = vector.load %arg12[%c24_48, %c32_49] : memref<56x64xf32, #tpu.memory_space<vmem>>, vector<8x32xf32>
    tpu.vector_store %arg12[%c24_48, %c32_49], %55 {strides = array<i32>} : memref<56x64xf32, #tpu.memory_space<vmem>>, vector<8x32xf32>,
    %57 = vector.extract_strided_slice %16 {offsets = [0, 33], sizes = [8, 31], strides = [1, 1]} : vector<8x64xf32> to vector<8x31xf32>
    %c32_50 = arith.constant 32 : index
    %c32_51 = arith.constant 32 : index
    %58 = vector.load %arg12[%c32_50, %c32_51] : memref<56x64xf32, #tpu.memory_space<vmem>>, vector<8x31xf32>
    tpu.vector_store %arg12[%c32_50, %c32_51], %57 {strides = array<i32>} : memref<56x64xf32, #tpu.memory_space<vmem>>, vector<8x31xf32>,
    %cst_52 = arith.constant 0.000000e+00 : f32
    %59 = vector.broadcast %cst_52 : f32 to vector<8x1xf32>
    %c32_53 = arith.constant 32 : index
    %c63 = arith.constant 63 : index
    %60 = vector.load %arg12[%c32_53, %c63] : memref<56x64xf32, #tpu.memory_space<vmem>>, vector<8x1xf32>
    tpu.vector_store %arg12[%c32_53, %c63], %59 {strides = array<i32>} : memref<56x64xf32, #tpu.memory_space<vmem>>, vector<8x1xf32>,
    %61 = vector.extract_strided_slice %16 {offsets = [0, 34], sizes = [8, 30], strides = [1, 1]} : vector<8x64xf32> to vector<8x30xf32>
    %c40_54 = arith.constant 40 : index
    %c32_55 = arith.constant 32 : index
    %62 = vector.load %arg12[%c40_54, %c32_55] : memref<56x64xf32, #tpu.memory_space<vmem>>, vector<8x30xf32>
    tpu.vector_store %arg12[%c40_54, %c32_55], %61 {strides = array<i32>} : memref<56x64xf32, #tpu.memory_space<vmem>>, vector<8x30xf32>,
    %cst_56 = arith.constant 0.000000e+00 : f32
    %63 = vector.broadcast %cst_56 : f32 to vector<8x2xf32>
    %c40_57 = arith.constant 40 : index
    %c62 = arith.constant 62 : index
    %64 = vector.load %arg12[%c40_57, %c62] : memref<56x64xf32, #tpu.memory_space<vmem>>, vector<8x2xf32>
    tpu.vector_store %arg12[%c40_57, %c62], %63 {strides = array<i32>} : memref<56x64xf32, #tpu.memory_space<vmem>>, vector<8x2xf32>,
    %65 = vector.extract_strided_slice %16 {offsets = [0, 35], sizes = [8, 29], strides = [1, 1]} : vector<8x64xf32> to vector<8x29xf32>
    %c48_58 = arith.constant 48 : index
    %c32_59 = arith.constant 32 : index
    %66 = vector.load %arg12[%c48_58, %c32_59] : memref<56x64xf32, #tpu.memory_space<vmem>>, vector<8x29xf32>
    tpu.vector_store %arg12[%c48_58, %c32_59], %65 {strides = array<i32>} : memref<56x64xf32, #tpu.memory_space<vmem>>, vector<8x29xf32>,
    %cst_60 = arith.constant 0.000000e+00 : f32
    %67 = vector.broadcast %cst_60 : f32 to vector<8x3xf32>
    %c48_61 = arith.constant 48 : index
    %c61 = arith.constant 61 : index
    %68 = vector.load %arg12[%c48_61, %c61] : memref<56x64xf32, #tpu.memory_space<vmem>>, vector<8x3xf32>
    tpu.vector_store %arg12[%c48_61, %c61], %67 {strides = array<i32>} : memref<56x64xf32, #tpu.memory_space<vmem>>, vector<8x3xf32>,
    %c0_62 = arith.constant 0 : index
    %c0_63 = arith.constant 0 : index
    %69 = vector.load %arg12[%c0_62, %c0_63] : memref<56x64xf32, #tpu.memory_space<vmem>>, vector<56x64xf32>
    %70 = arith.truncf %69 : vector<56x64xf32> to vector<56x64xbf16>
    %c0_64 = arith.constant 0 : index
    %c0_65 = arith.constant 0 : index
    %71 = vector.load %arg4[%c0_64, %c0_65] : memref<8x56xbf16, #tpu.memory_space<vmem>>, vector<8x56xbf16>
    %cst_66 = arith.constant dense<0.000000e+00> : vector<8x64xf32>
    %72 = tpu.matmul %71, %70, %cst_66 {dimension_numbers = #tpu.dot_dimension_numbers<[1], [0], [0], [1], [0, 0, 1, 1], [], []>} : vector<8x56xbf16>, vector<56x64xbf16>, vector<8x64xf32> -> vector<8x64xf32>
    %c0_67 = arith.constant 0 : index
    %c0_68 = arith.constant 0 : index
    %73 = vector.load %arg5[%c0_67, %c0_68] : memref<8x1xf32, #tpu.memory_space<vmem>>, vector<8x1xf32>
    %74 = vector.broadcast %73 : vector<8x1xf32> to vector<8x64xf32>
    %75 = arith.addf %72, %74 : vector<8x64xf32>
    %cst_69 = arith.constant 0.000000e+00 : f32
    %76 = vector.broadcast %cst_69 : f32 to vector<8x64xf32>
    %77 = arith.maximumf %75, %76 : vector<8x64xf32>
    %cst_70 = arith.constant 0.000000e+00 : f32
    %78 = vector.broadcast %cst_70 : f32 to vector<8x1xf32>
    %c0_71 = arith.constant 0 : index
    %c0_72 = arith.constant 0 : index
    %79 = vector.load %arg13[%c0_71, %c0_72] : memref<24x64xf32, #tpu.memory_space<vmem>>, vector<8x1xf32>
    tpu.vector_store %arg13[%c0_71, %c0_72], %78 {strides = array<i32>} : memref<24x64xf32, #tpu.memory_space<vmem>>, vector<8x1xf32>,
    %80 = vector.extract_strided_slice %77 {offsets = [0, 0], sizes = [8, 31], strides = [1, 1]} : vector<8x64xf32> to vector<8x31xf32>
    %c0_73 = arith.constant 0 : index
    %c1_74 = arith.constant 1 : index
    %81 = vector.load %arg13[%c0_73, %c1_74] : memref<24x64xf32, #tpu.memory_space<vmem>>, vector<8x31xf32>
    tpu.vector_store %arg13[%c0_73, %c1_74], %80 {strides = array<i32>} : memref<24x64xf32, #tpu.memory_space<vmem>>, vector<8x31xf32>,
    %82 = vector.extract_strided_slice %77 {offsets = [0, 0], sizes = [8, 32], strides = [1, 1]} : vector<8x64xf32> to vector<8x32xf32>
    %c8_75 = arith.constant 8 : index
    %c0_76 = arith.constant 0 : index
    %83 = vector.load %arg13[%c8_75, %c0_76] : memref<24x64xf32, #tpu.memory_space<vmem>>, vector<8x32xf32>
    tpu.vector_store %arg13[%c8_75, %c0_76], %82 {strides = array<i32>} : memref<24x64xf32, #tpu.memory_space<vmem>>, vector<8x32xf32>,
    %84 = vector.extract_strided_slice %77 {offsets = [0, 1], sizes = [8, 31], strides = [1, 1]} : vector<8x64xf32> to vector<8x31xf32>
    %c16_77 = arith.constant 16 : index
    %c0_78 = arith.constant 0 : index
    %85 = vector.load %arg13[%c16_77, %c0_78] : memref<24x64xf32, #tpu.memory_space<vmem>>, vector<8x31xf32>
    tpu.vector_store %arg13[%c16_77, %c0_78], %84 {strides = array<i32>} : memref<24x64xf32, #tpu.memory_space<vmem>>, vector<8x31xf32>,
    %cst_79 = arith.constant 0.000000e+00 : f32
    %86 = vector.broadcast %cst_79 : f32 to vector<8x1xf32>
    %c16_80 = arith.constant 16 : index
    %c31_81 = arith.constant 31 : index
    %87 = vector.load %arg13[%c16_80, %c31_81] : memref<24x64xf32, #tpu.memory_space<vmem>>, vector<8x1xf32>
    tpu.vector_store %arg13[%c16_80, %c31_81], %86 {strides = array<i32>} : memref<24x64xf32, #tpu.memory_space<vmem>>, vector<8x1xf32>,
    %cst_82 = arith.constant 0.000000e+00 : f32
    %88 = vector.broadcast %cst_82 : f32 to vector<8x1xf32>
    %c0_83 = arith.constant 0 : index
    %c32_84 = arith.constant 32 : index
    %89 = vector.load %arg13[%c0_83, %c32_84] : memref<24x64xf32, #tpu.memory_space<vmem>>, vector<8x1xf32>
    tpu.vector_store %arg13[%c0_83, %c32_84], %88 {strides = array<i32>} : memref<24x64xf32, #tpu.memory_space<vmem>>, vector<8x1xf32>,
    %90 = vector.extract_strided_slice %77 {offsets = [0, 32], sizes = [8, 31], strides = [1, 1]} : vector<8x64xf32> to vector<8x31xf32>
    %c0_85 = arith.constant 0 : index
    %c33_86 = arith.constant 33 : index
    %91 = vector.load %arg13[%c0_85, %c33_86] : memref<24x64xf32, #tpu.memory_space<vmem>>, vector<8x31xf32>
    tpu.vector_store %arg13[%c0_85, %c33_86], %90 {strides = array<i32>} : memref<24x64xf32, #tpu.memory_space<vmem>>, vector<8x31xf32>,
    %92 = vector.extract_strided_slice %77 {offsets = [0, 32], sizes = [8, 32], strides = [1, 1]} : vector<8x64xf32> to vector<8x32xf32>
    %c8_87 = arith.constant 8 : index
    %c32_88 = arith.constant 32 : index
    %93 = vector.load %arg13[%c8_87, %c32_88] : memref<24x64xf32, #tpu.memory_space<vmem>>, vector<8x32xf32>
    tpu.vector_store %arg13[%c8_87, %c32_88], %92 {strides = array<i32>} : memref<24x64xf32, #tpu.memory_space<vmem>>, vector<8x32xf32>,
    %94 = vector.extract_strided_slice %77 {offsets = [0, 33], sizes = [8, 31], strides = [1, 1]} : vector<8x64xf32> to vector<8x31xf32>
    %c16_89 = arith.constant 16 : index
    %c32_90 = arith.constant 32 : index
    %95 = vector.load %arg13[%c16_89, %c32_90] : memref<24x64xf32, #tpu.memory_space<vmem>>, vector<8x31xf32>
    tpu.vector_store %arg13[%c16_89, %c32_90], %94 {strides = array<i32>} : memref<24x64xf32, #tpu.memory_space<vmem>>, vector<8x31xf32>,
    %cst_91 = arith.constant 0.000000e+00 : f32
    %96 = vector.broadcast %cst_91 : f32 to vector<8x1xf32>
    %c16_92 = arith.constant 16 : index
    %c63_93 = arith.constant 63 : index
    %97 = vector.load %arg13[%c16_92, %c63_93] : memref<24x64xf32, #tpu.memory_space<vmem>>, vector<8x1xf32>
    tpu.vector_store %arg13[%c16_92, %c63_93], %96 {strides = array<i32>} : memref<24x64xf32, #tpu.memory_space<vmem>>, vector<8x1xf32>,
    %c0_94 = arith.constant 0 : index
    %c0_95 = arith.constant 0 : index
    %98 = vector.load %arg13[%c0_94, %c0_95] : memref<24x64xf32, #tpu.memory_space<vmem>>, vector<24x64xf32>
    %99 = arith.truncf %98 : vector<24x64xf32> to vector<24x64xbf16>
    %c0_96 = arith.constant 0 : index
    %c0_97 = arith.constant 0 : index
    %100 = vector.load %arg6[%c0_96, %c0_97] : memref<8x24xbf16, #tpu.memory_space<vmem>>, vector<8x24xbf16>
    %cst_98 = arith.constant dense<0.000000e+00> : vector<8x64xf32>
    %101 = tpu.matmul %100, %99, %cst_98 {dimension_numbers = #tpu.dot_dimension_numbers<[1], [0], [0], [1], [0, 0, 1, 1], [], []>} : vector<8x24xbf16>, vector<24x64xbf16>, vector<8x64xf32> -> vector<8x64xf32>
    %c0_99 = arith.constant 0 : index
    %c0_100 = arith.constant 0 : index
    %102 = vector.load %arg7[%c0_99, %c0_100] : memref<8x1xf32, #tpu.memory_space<vmem>>, vector<8x1xf32>
    %103 = vector.broadcast %102 : vector<8x1xf32> to vector<8x64xf32>
    %104 = arith.addf %101, %103 : vector<8x64xf32>
    %cst_101 = arith.constant 0.000000e+00 : f32
    %105 = vector.broadcast %cst_101 : f32 to vector<8x64xf32>
    %106 = arith.maximumf %104, %105 : vector<8x64xf32>
    %107 = arith.truncf %106 : vector<8x64xf32> to vector<8x64xbf16>
    %c0_102 = arith.constant 0 : index
    %c0_103 = arith.constant 0 : index
    %108 = vector.load %arg8[%c0_102, %c0_103] : memref<8x8xbf16, #tpu.memory_space<vmem>>, vector<8x8xbf16>
    %cst_104 = arith.constant dense<0.000000e+00> : vector<8x64xf32>
    %109 = tpu.matmul %108, %107, %cst_104 {dimension_numbers = #tpu.dot_dimension_numbers<[1], [0], [0], [1], [0, 0, 1, 1], [], []>} : vector<8x8xbf16>, vector<8x64xbf16>, vector<8x64xf32> -> vector<8x64xf32>
    %c0_105 = arith.constant 0 : index
    %c0_106 = arith.constant 0 : index
    %110 = vector.load %arg9[%c0_105, %c0_106] : memref<8x1xf32, #tpu.memory_space<vmem>>, vector<8x1xf32>
    %111 = vector.broadcast %110 : vector<8x1xf32> to vector<8x64xf32>
    %112 = arith.addf %109, %111 : vector<8x64xf32>
    %cst_107 = arith.constant 0.000000e+00 : f32
    %113 = vector.broadcast %cst_107 : f32 to vector<8x64xf32>
    %114 = arith.maximumf %112, %113 : vector<8x64xf32>
    %115 = arith.truncf %114 : vector<8x64xf32> to vector<8x64xbf16>
    %116 = vector.extract_strided_slice %115 {offsets = [0, 0], sizes = [8, 32], strides = [1, 1]} : vector<8x64xbf16> to vector<8x32xbf16>
    %c0_108 = arith.constant 0 : index
    %c0_109 = arith.constant 0 : index
    %c0_110 = arith.constant 0 : index
    %117 = vector.load %arg10[%c0_108, %c0_109, %c0_110] : memref<2x8x32xbf16, #tpu.memory_space<vmem>>, vector<1x8x32xbf16>
    %118 = vector.shape_cast %117 : vector<1x8x32xbf16> to vector<8x32xbf16>
    %119 = vector.shape_cast %116 : vector<8x32xbf16> to vector<1x8x32xbf16>
    tpu.vector_store %arg10[%c0_108, %c0_109, %c0_110], %119 {strides = array<i32>} : memref<2x8x32xbf16, #tpu.memory_space<vmem>>, vector<1x8x32xbf16>,
    %120 = vector.extract_strided_slice %115 {offsets = [0, 32], sizes = [8, 32], strides = [1, 1]} : vector<8x64xbf16> to vector<8x32xbf16>
    %c1_111 = arith.constant 1 : index
    %c0_112 = arith.constant 0 : index
    %c0_113 = arith.constant 0 : index
    %121 = vector.load %arg10[%c1_111, %c0_112, %c0_113] : memref<2x8x32xbf16, #tpu.memory_space<vmem>>, vector<1x8x32xbf16>
    %122 = vector.shape_cast %121 : vector<1x8x32xbf16> to vector<8x32xbf16>
    %123 = vector.shape_cast %120 : vector<8x32xbf16> to vector<1x8x32xbf16>
    tpu.vector_store %arg10[%c1_111, %c0_112, %c0_113], %123 {strides = array<i32>} : memref<2x8x32xbf16, #tpu.memory_space<vmem>>, vector<1x8x32xbf16>,
    return
  }
  func.func @transform_0(%arg0: i32) -> (i32, i32, i32) {
    %c0_i32 = arith.constant 0 : i32
    %c0_i32_0 = arith.constant 0 : i32
    %c0_i32_1 = arith.constant 0 : i32
    return %arg0, %c0_i32, %c0_i32_0 : i32, i32, i32
  }
  func.func @transform_1(%arg0: i32) -> (i32, i32) {
    %c0_i32 = arith.constant 0 : i32
    %c0_i32_0 = arith.constant 0 : i32
    %c0_i32_1 = arith.constant 0 : i32
    return %c0_i32, %c0_i32_0 : i32, i32
  }
  func.func @transform_2(%arg0: i32) -> (i32, i32) {
    %c0_i32 = arith.constant 0 : i32
    %c0_i32_0 = arith.constant 0 : i32
    %c0_i32_1 = arith.constant 0 : i32
    return %c0_i32, %c0_i32_0 : i32, i32
  }
  func.func @transform_3(%arg0: i32) -> (i32, i32) {
    %c0_i32 = arith.constant 0 : i32
    %c0_i32_0 = arith.constant 0 : i32
    %c0_i32_1 = arith.constant 0 : i32
    return %c0_i32, %c0_i32_0 : i32, i32
  }
  func.func @transform_4(%arg0: i32) -> (i32, i32) {
    %c0_i32 = arith.constant 0 : i32
    %c0_i32_0 = arith.constant 0 : i32
    %c0_i32_1 = arith.constant 0 : i32
    return %c0_i32, %c0_i32_0 : i32, i32
  }
  func.func @transform_5(%arg0: i32) -> (i32, i32) {
    %c0_i32 = arith.constant 0 : i32
    %c0_i32_0 = arith.constant 0 : i32
    %c0_i32_1 = arith.constant 0 : i32
    return %c0_i32, %c0_i32_0 : i32, i32
  }
  func.func @transform_6(%arg0: i32) -> (i32, i32) {
    %c0_i32 = arith.constant 0 : i32
    %c0_i32_0 = arith.constant 0 : i32
    %c0_i32_1 = arith.constant 0 : i32
    return %c0_i32, %c0_i32_0 : i32, i32
  }
  func.func @transform_7(%arg0: i32) -> (i32, i32) {
    %c0_i32 = arith.constant 0 : i32
    %c0_i32_0 = arith.constant 0 : i32
    %c0_i32_1 = arith.constant 0 : i32
    return %c0_i32, %c0_i32_0 : i32, i32
  }
  func.func @transform_8(%arg0: i32) -> (i32, i32) {
    %c0_i32 = arith.constant 0 : i32
    %c0_i32_0 = arith.constant 0 : i32
    %c0_i32_1 = arith.constant 0 : i32
    return %c0_i32, %c0_i32_0 : i32, i32
  }
  func.func @transform_9(%arg0: i32) -> (i32, i32, i32) {
    %c0_i32 = arith.constant 0 : i32
    %c0_i32_0 = arith.constant 0 : i32
    %c0_i32_1 = arith.constant 0 : i32
    return %arg0, %c0_i32, %c0_i32_0 : i32, i32, i32
  }
}

</mosaic_0001>

<llo_original>
// kernel: forward.1
$region0: #{forward.1}
  #allocation0 [shape = 'u32[]', space=smem, size = 0x4, offset = 0x4, fixed_abs, tag = 'smem constant byte address 0x4 - core index']
  #allocation1 [shape = 'u32[72,128]{1,0:T(1,128)}', space=vmem, size = 0x9000, scoped, tag = 'internal scratch']
  #allocation2 [shape = 'f32[4,64]{1,0:T(4,128)}', space=vmem, size = 0x800, scoped, tag = 'scratch operand']
  #allocation3 [shape = 'f32[56,64]{1,0:T(8,128)}', space=vmem, size = 0x7000, scoped, tag = 'scratch operand']
  #allocation4 [shape = 'f32[24,64]{1,0:T(8,128)}', space=vmem, size = 0x3000, scoped, tag = 'scratch operand']
  %s0 = inlined_call_operand.vmem [shape: bf16[2,4,32], index: 0, kind: input, shape index: {}]
  %s1 = inlined_call_operand.hbm [shape: bf16[8,4], index: 1, kind: input, shape index: {}]
  %s2 = inlined_call_operand.hbm [shape: f32[8,1], index: 2, kind: input, shape index: {}]
  %s3 = inlined_call_operand.hbm [shape: bf16[8,56], index: 3, kind: input, shape index: {}]
  %s4 = inlined_call_operand.hbm [shape: f32[8,1], index: 4, kind: input, shape index: {}]
  %s5 = inlined_call_operand.hbm [shape: bf16[8,24], index: 5, kind: input, shape index: {}]
  %s6 = inlined_call_operand.vmem [shape: f32[8,1], index: 6, kind: input, shape index: {}]
  %s7 = inlined_call_operand.hbm [shape: bf16[8,8], index: 7, kind: input, shape index: {}]
  %s8 = inlined_call_operand.vmem [shape: f32[8,1], index: 8, kind: input, shape index: {}]
  %s9 = inlined_call_operand.hbm [shape: bf16[2,8,32], index: 9, kind: output, shape index: {}]
  %s10 = sld [smem:[#allocation0]]
  $region70: #{forward.1} parent=0
    _
  %s12 = ssub.s32 1, %s10
  %s13 = scalar_select 0, %s12, %s10
  $region1: #{forward.1} parent=0
    #allocation5 [shape = 'u8[2048]{0}', space=vmem, size = 0x800, scoped, tag = 'input window, operand 1, single buffered']
    #allocation6 [shape = 's32[1]{0}', space=sflag, size = 0x4, scoped, tag = 'scoped memory for forward.1']
    #allocation7 [shape = 's32[1]{0}', space=sflag, size = 0x4, scoped, tag = 'scoped memory for forward.1']
    #allocation8 [shape = 'u8[4096]{0}', space=vmem, size = 0x1000, scoped, tag = 'input window, operand 2, single buffered']
    #allocation9 [shape = 's32[1]{0}', space=sflag, size = 0x4, scoped, tag = 'scoped memory for forward.1']
    #allocation10 [shape = 'u8[2048]{0}', space=vmem, size = 0x800, scoped, tag = 'input window, operand 3, single buffered']
    #allocation11 [shape = 'u8[4096]{0}', space=vmem, size = 0x1000, scoped, tag = 'input window, operand 4, single buffered']
    #allocation12 [shape = 's32[1]{0}', space=sflag, size = 0x4, scoped, tag = 'scoped memory for forward.1']
    #allocation13 [shape = 'u8[2048]{0}', space=vmem, size = 0x800, scoped, tag = 'input window, operand 5, single buffered']
    #allocation14 [shape = 'u8[2048]{0}', space=vmem, size = 0x800, scoped, tag = 'input window, operand 7, single buffered']
    #allocation15 [shape = 's32[1]{0}', space=sflag, size = 0x4, scoped, tag = 'scoped memory for forward.1']
    #allocation16 [shape = 'u8[4096]{0}', space=vmem, size = 0x1000, scoped, tag = 'output window, operand 0, single buffered']
    %14 = vsyncpa [#allocation6], 0
    %15 = vsyncpa [#allocation9], 0
    %16 = vsyncpa [#allocation12], 0
    %17 = vsyncpa [#allocation15], 0
    %18 = vsyncpa [#allocation7], 0
    // Predicated region
    $region2: #{forward.1} parent=1 // pred_check
      _
    $region3: #{forward.1} parent=1 // pred_check_branch
      %20 = sbr.rel (0) target = $region5
    $region4: #{forward.1} parent=1 // pred_region
      _
    $region5: #{forward.1} parent=1 // pred_fallthru
      _
    // Predicated region
    $region6: #{forward.1} parent=1 // pred_check
      _
    $region7: #{forward.1} parent=1 // pred_check_branch
      %22 = sbr.rel (0) target = $region9
    $region8: #{forward.1} parent=1 // pred_region
      %24 = vsyncadd [#allocation6], 0
      %s26 = sshll.u32 %s1, 4
      %s27 = int_to_ptr.hbm [resolvable:$true] %s26
      %s28 = sshll.u32 [#allocation5], 4
      %s29 = int_to_ptr.vmem [resolvable:$true] %s28
      %31 = dma.hbm_to_vmem [thread:$0]  %s27, 64, %s29, [#allocation6]
    $region9: #{forward.1} parent=1 // pred_fallthru
      _
    // Predicated region
    $region10: #{forward.1} parent=1 // pred_check
      _
    $region11: #{forward.1} parent=1 // pred_check_branch
      %33 = sbr.rel (0) target = $region13
    $region12: #{forward.1} parent=1 // pred_region
      %35 = vsyncadd [#allocation9], 0
      %s37 = sshll.u32 %s2, 4
      %s38 = int_to_ptr.hbm [resolvable:$true] %s37
      %s39 = sshll.u32 [#allocation8], 4
      %s40 = int_to_ptr.vmem [resolvable:$true] %s39
      %42 = dma.hbm_to_vmem [thread:$0]  %s38, 128, %s40, [#allocation9]
    $region13: #{forward.1} parent=1 // pred_fallthru
      _
    // Predicated region
    $region14: #{forward.1} parent=1 // pred_check
      _
    $region15: #{forward.1} parent=1 // pred_check_branch
      %44 = sbr.rel (0) target = $region17
    $region16: #{forward.1} parent=1 // pred_region
      %46 = vsyncadd [#allocation9], 0
      %s48 = sshll.u32 %s3, 4
      %s49 = int_to_ptr.hbm [resolvable:$true] %s48
      %s50 = sshll.u32 [#allocation10], 4
      %s51 = int_to_ptr.vmem [resolvable:$true] %s50
      %53 = dma.hbm_to_vmem [thread:$0]  %s49, 64, %s51, [#allocation9]
    $region17: #{forward.1} parent=1 // pred_fallthru
      _
    // Predicated region
    $region18: #{forward.1} parent=1 // pred_check
      _
    $region19: #{forward.1} parent=1 // pred_check_branch
      %55 = sbr.rel (0) target = $region21
    $region20: #{forward.1} parent=1 // pred_region
      %57 = vsyncadd [#allocation12], 0
      %s59 = sshll.u32 %s4, 4
      %s60 = int_to_ptr.hbm [resolvable:$true] %s59
      %s61 = sshll.u32 [#allocation11], 4
      %s62 = int_to_ptr.vmem [resolvable:$true] %s61
      %64 = dma.hbm_to_vmem [thread:$0]  %s60, 128, %s62, [#allocation12]
    $region21: #{forward.1} parent=1 // pred_fallthru
      _
    // Predicated region
    $region22: #{forward.1} parent=1 // pred_check
      _
    $region23: #{forward.1} parent=1 // pred_check_branch
      %66 = sbr.rel (0) target = $region25
    $region24: #{forward.1} parent=1 // pred_region
      %68 = vsyncadd [#allocation12], 0
      %s70 = sshll.u32 %s5, 4
      %s71 = int_to_ptr.hbm [resolvable:$true] %s70
      %s72 = sshll.u32 [#allocation13], 4
      %s73 = int_to_ptr.vmem [resolvable:$true] %s72
      %75 = dma.hbm_to_vmem [thread:$0]  %s71, 64, %s73, [#allocation12]
    $region25: #{forward.1} parent=1 // pred_fallthru
      _
    // Predicated region
    $region26: #{forward.1} parent=1 // pred_check
      _
    $region27: #{forward.1} parent=1 // pred_check_branch
      %77 = sbr.rel (0) target = $region29
    $region28: #{forward.1} parent=1 // pred_region
      _
    $region29: #{forward.1} parent=1 // pred_fallthru
      _
    // Predicated region
    $region30: #{forward.1} parent=1 // pred_check
      _
    $region31: #{forward.1} parent=1 // pred_check_branch
      %79 = sbr.rel (0) target = $region33
    $region32: #{forward.1} parent=1 // pred_region
      %81 = vsyncadd [#allocation15], 0
      %s83 = sshll.u32 %s7, 4
      %s84 = int_to_ptr.hbm [resolvable:$true] %s83
      %s85 = sshll.u32 [#allocation14], 4
      %s86 = int_to_ptr.vmem [resolvable:$true] %s85
      %88 = dma.hbm_to_vmem [thread:$0]  %s84, 64, %s86, [#allocation15]
    $region33: #{forward.1} parent=1 // pred_fallthru
      _
    // Predicated region
    $region34: #{forward.1} parent=1 // pred_check
      _
    $region35: #{forward.1} parent=1 // pred_check_branch
      %90 = sbr.rel (0) target = $region37
    $region36: #{forward.1} parent=1 // pred_region
      _
    $region37: #{forward.1} parent=1 // pred_fallthru
      _
    // Predicated region
    $region38: #{forward.1} parent=1 // pred_check
      _
    $region39: #{forward.1} parent=1 // pred_check_branch
      %92 = sbr.rel (0) target = $region41
    $region40: #{forward.1} parent=1 // pred_region
      %94 = dma.done [#allocation6], 64
    $region41: #{forward.1} parent=1 // pred_fallthru
      _
    // Predicated region
    $region42: #{forward.1} parent=1 // pred_check
      _
    $region43: #{forward.1} parent=1 // pred_check_branch
      %96 = sbr.rel (0) target = $region45
    $region44: #{forward.1} parent=1 // pred_region
      %98 = dma.done [#allocation9], 128
    $region45: #{forward.1} parent=1 // pred_fallthru
      _
    // Predicated region
    $region46: #{forward.1} parent=1 // pred_check
      _
    $region47: #{forward.1} parent=1 // pred_check_branch
      %100 = sbr.rel (0) target = $region49
    $region48: #{forward.1} parent=1 // pred_region
      %102 = dma.done [#allocation9], 64
    $region49: #{forward.1} parent=1 // pred_fallthru
      _
    // Predicated region
    $region50: #{forward.1} parent=1 // pred_check
      _
    $region51: #{forward.1} parent=1 // pred_check_branch
      %104 = sbr.rel (0) target = $region53
    $region52: #{forward.1} parent=1 // pred_region
      %106 = dma.done [#allocation12], 128
    $region53: #{forward.1} parent=1 // pred_fallthru
      _
    // Predicated region
    $region54: #{forward.1} parent=1 // pred_check
      _
    $region55: #{forward.1} parent=1 // pred_check_branch
      %108 = sbr.rel (0) target = $region57
    $region56: #{forward.1} parent=1 // pred_region
      %110 = dma.done [#allocation12], 64
    $region57: #{forward.1} parent=1 // pred_fallthru
      _
    // Predicated region
    $region58: #{forward.1} parent=1 // pred_check
      _
    $region59: #{forward.1} parent=1 // pred_check_branch
      %112 = sbr.rel (0) target = $region61
    $region60: #{forward.1} parent=1 // pred_region
      %114 = dma.done [#allocation15], 64
    $region61: #{forward.1} parent=1 // pred_fallthru
      _
    %v116 = vld [vmem:[%s0] sm:$0x3]
    %v117 = vunpack.c.l.bf16 %v116
    %vm118 = vcmask 257024
    %119 = vst.msk [vmem:[#allocation2] sm:$0xf] %vm118, %v117
    %s120 = scalar_lea.vmem %s0, 2
    %v121 = vld [vmem:[%s120] sm:$0x3]
    %v122 = vunpack.c.l.bf16 %v121
    %124 = vst [vmem:[#allocation1] ss:$2 sm:$0xff] %v122
    %v125 = vld.sshfl [vmem:[#allocation1] sm:$0xff pattern:$0x75316420]
    %126 = vrot.lane.b32.xlu0 %v125, 32
    %v127 = vpop.permute.xlu0 %126
    %vm129 = vcmask 519424
    %130 = vst.msk [vmem:[#allocation2] sm:$0xf] %vm129, %v127
    %v131 = vld [vmem:[#allocation2] sm:$0xf]
    %v132 = vpack.c.bf16 %v131, %v131
    %v133 = vld [vmem:[#allocation5] sm:$0xf]
    %v134 = vld [vmem:[#allocation8] sm:$0xff]
    %136 = vset.pattern.permute.xlu0 0
    %137 = vperm.xlu0 %136, %v134
    %v138 = vpop.permute.xlu0 %137
    %vm140 = vcmask 31744
    %v142 = vsel %vm140, %v133, 0
    %vm144 = vcmask 1041408
    %v146 = vsel %vm144, %v132, 0
    %148 = vmatpush.bf16.msra.mxu0 0
    %149 = vmatpush.bf16.msra.mxu0 0
    %150 = vmatpush.bf16.msra.mxu0 0
    %151 = vmatpush.bf16.msra.mxu0 0
    %152 = vmatpush.bf16.msra.mxu0 0
    %153 = vmatpush.bf16.msra.mxu0 0
    %154 = vmatpush.bf16.msra.mxu0 0
    %155 = vmatpush.bf16.msra.mxu0 %v146
    %156 = vmatmul.bf16.gmra.mxu0 %v142
    %v157 = vpop.f32.mrf.mxu0
    %v158 = vadd.f32 %v138, %v157
    %v159 = vpop.f32.mrf.mxu0
    %160 = vdwg.mxu0
    %v161 = vmax.f32 %v158, 0.0
    %vm162 = vcmask 23552
    %163 = vst.msk [vmem:[#allocation3] sm:$0xff] %vm162, 0.0
    %165 = vrot.lane.b32.xlu0 %v161, 3
    %v166 = vpop.permute.xlu0 %165
    %vm168 = vcmask 261144
    %169 = vst.msk [vmem:[#allocation3] sm:$0xff] %vm168, %v166
    %vm170 = vcmask 15360
    %171 = vst.msk [vmem:[#allocation3 + $0x8] sm:$0xff] %vm170, 0.0
    %172 = vrot.lane.b32.xlu0 %v161, 2
    %v173 = vpop.permute.xlu0 %172
    %vm175 = vcmask 261136
    %176 = vst.msk [vmem:[#allocation3 + $0x8] sm:$0xff] %vm175, %v173
    %vm177 = vcmask 7168
    %178 = vst.msk [vmem:[#allocation3 + $0x10] sm:$0xff] %vm177, 0.0
    %179 = vrot.lane.b32.xlu0 %v161, 1
    %v180 = vpop.permute.xlu0 %179
    %vm182 = vcmask 261128
    %183 = vst.msk [vmem:[#allocation3 + $0x10] sm:$0xff] %vm182, %v180
    %vm184 = vcmask 261120
    %185 = vst.msk [vmem:[#allocation3 + $0x18] sm:$0xff] %vm184, %v161
    %186 = vrot.lane.b32.xlu0 %v161, 127
    %v187 = vpop.permute.xlu0 %186
    %vm189 = vcmask 252928
    %190 = vst.msk [vmem:[#allocation3 + $0x20] sm:$0xff] %vm189, %v187
    %vm191 = vcmask 261368
    %192 = vst.msk [vmem:[#allocation3 + $0x20] sm:$0xff] %vm191, 0.0
    %193 = vrot.lane.b32.xlu0 %v161, 126
    %v194 = vpop.permute.xlu0 %193
    %vm196 = vcmask 244736
    %197 = vst.msk [vmem:[#allocation3 + $0x28] sm:$0xff] %vm196, %v194
    %vm198 = vcmask 261360
    %199 = vst.msk [vmem:[#allocation3 + $0x28] sm:$0xff] %vm198, 0.0
    %200 = vrot.lane.b32.xlu0 %v161, 125
    %v201 = vpop.permute.xlu0 %200
    %vm203 = vcmask 236544
    %204 = vst.msk [vmem:[#allocation3 + $0x30] sm:$0xff] %vm203, %v201
    %vm205 = vcmask 261352
    %206 = vst.msk [vmem:[#allocation3 + $0x30] sm:$0xff] %vm205, 0.0
    %vm207 = vcmask 285952
    %208 = vst.msk [vmem:[#allocation3] sm:$0xff] %vm207, 0.0
    %vm209 = vcmask 523544
    %210 = vst.msk [vmem:[#allocation3] sm:$0xff] %vm209, %v166
    %vm211 = vcmask 277760
    %212 = vst.msk [vmem:[#allocation3 + $0x8] sm:$0xff] %vm211, 0.0
    %vm213 = vcmask 523536
    %214 = vst.msk [vmem:[#allocation3 + $0x8] sm:$0xff] %vm213, %v173
    %vm215 = vcmask 269568
    %216 = vst.msk [vmem:[#allocation3 + $0x10] sm:$0xff] %vm215, 0.0
    %vm217 = vcmask 523528
    %218 = vst.msk [vmem:[#allocation3 + $0x10] sm:$0xff] %vm217, %v180
    %vm219 = vcmask 523520
    %220 = vst.msk [vmem:[#allocation3 + $0x18] sm:$0xff] %vm219, %v161
    %vm221 = vcmask 515328
    %222 = vst.msk [vmem:[#allocation3 + $0x20] sm:$0xff] %vm221, %v187
    %vm223 = vcmask 523768
    %224 = vst.msk [vmem:[#allocation3 + $0x20] sm:$0xff] %vm223, 0.0
    %vm225 = vcmask 507136
    %226 = vst.msk [vmem:[#allocation3 + $0x28] sm:$0xff] %vm225, %v194
    %vm227 = vcmask 523760
    %228 = vst.msk [vmem:[#allocation3 + $0x28] sm:$0xff] %vm227, 0.0
    %vm229 = vcmask 498944
    %230 = vst.msk [vmem:[#allocation3 + $0x30] sm:$0xff] %vm229, %v201
    %vm231 = vcmask 523752
    %232 = vst.msk [vmem:[#allocation3 + $0x30] sm:$0xff] %vm231, 0.0
    %v233 = vld [vmem:[#allocation3] sm:$0xff]
    %v234 = vld [vmem:[#allocation3 + $0x8] sm:$0xff]
    %v235 = vld [vmem:[#allocation3 + $0x10] sm:$0xff]
    %v236 = vld [vmem:[#allocation3 + $0x18] sm:$0xff]
    %v237 = vld [vmem:[#allocation3 + $0x20] sm:$0xff]
    %v238 = vld [vmem:[#allocation3 + $0x28] sm:$0xff]
    %v239 = vld [vmem:[#allocation3 + $0x30] sm:$0xff]
    %v240 = vpack.c.bf16 %v234, %v233
    %v241 = vpack.c.bf16 %v236, %v235
    %v242 = vpack.c.bf16 %v238, %v237
    %v243 = vpack.c.bf16 %v239, %v239
    %v244 = vld [vmem:[#allocation10] sm:$0xf]
    %v245 = vld [vmem:[#allocation11] sm:$0xff]
    %247 = vset.pattern.permute.xlu0 0
    %248 = vperm.xlu0 %247, %v245
    %v249 = vpop.permute.xlu0 %248
    %vm251 = vcmask 457728
    %v253 = vsel %vm251, %v244, 0
    %vm255 = vcmask 1043456
    %v257 = vsel %vm255, %v243, 0
    %259 = vmatpush.bf16.msra.mxu0 0
    %260 = vmatpush.bf16.msra.mxu0 0
    %261 = vmatpush.bf16.msra.mxu0 0
    %262 = vmatpush.bf16.msra.mxu0 0
    %263 = vmatpush.bf16.msra.mxu0 %v257
    %264 = vmatpush.bf16.msra.mxu0 %v242
    %265 = vmatpush.bf16.msra.mxu0 %v241
    %266 = vmatpush.bf16.msra.mxu0 %v240
    %267 = vmatmul.bf16.gmra.mxu0 %v253
    %v268 = vpop.f32.mrf.mxu0
    %v269 = vadd.f32 %v249, %v268
    %v270 = vpop.f32.mrf.mxu0
    %271 = vdwg.mxu0
    %v272 = vmax.f32 %v269, 0.0
    %273 = vst.msk [vmem:[#allocation4] sm:$0xff] %vm177, 0.0
    %275 = vrot.lane.b32.xlu0 %v272, 1
    %v276 = vpop.permute.xlu0 %275
    %278 = vst.msk [vmem:[#allocation4] sm:$0xff] %vm182, %v276
    %279 = vst.msk [vmem:[#allocation4 + $0x8] sm:$0xff] %vm184, %v272
    %280 = vrot.lane.b32.xlu0 %v272, 127
    %v281 = vpop.permute.xlu0 %280
    %283 = vst.msk [vmem:[#allocation4 + $0x10] sm:$0xff] %vm189, %v281
    %284 = vst.msk [vmem:[#allocation4 + $0x10] sm:$0xff] %vm191, 0.0
    %285 = vst.msk [vmem:[#allocation4] sm:$0xff] %vm215, 0.0
    %286 = vst.msk [vmem:[#allocation4] sm:$0xff] %vm217, %v276
    %287 = vst.msk [vmem:[#allocation4 + $0x8] sm:$0xff] %vm219, %v272
    %288 = vst.msk [vmem:[#allocation4 + $0x10] sm:$0xff] %vm221, %v281
    %289 = vst.msk [vmem:[#allocation4 + $0x10] sm:$0xff] %vm223, 0.0
    %v290 = vld [vmem:[#allocation4] sm:$0xff]
    %v291 = vld [vmem:[#allocation4 + $0x8] sm:$0xff]
    %v292 = vld [vmem:[#allocation4 + $0x10] sm:$0xff]
    %v293 = vpack.c.bf16 %v291, %v290
    %v294 = vpack.c.bf16 %v292, %v292
    %v295 = vld [vmem:[#allocation13] sm:$0xf]
    %v296 = vld [vmem:[%s6] sm:$0xff]
    %298 = vset.pattern.permute.xlu0 0
    %299 = vperm.xlu0 %298, %v296
    %v300 = vpop.permute.xlu0 %299
    %vm302 = vcmask 195584
    %v304 = vsel %vm302, %v295, 0
    %v307 = vsel %vm255, %v294, 0
    %309 = vmatpush.bf16.msra.mxu0 0
    %310 = vmatpush.bf16.msra.mxu0 0
    %311 = vmatpush.bf16.msra.mxu0 0
    %312 = vmatpush.bf16.msra.mxu0 0
    %313 = vmatpush.bf16.msra.mxu0 0
    %314 = vmatpush.bf16.msra.mxu0 0
    %315 = vmatpush.bf16.msra.mxu0 %v307
    %316 = vmatpush.bf16.msra.mxu0 %v293
    %317 = vmatmul.bf16.gmra.mxu0 %v304
    %v318 = vpop.f32.mrf.mxu0
    %v319 = vadd.f32 %v300, %v318
    %v320 = vpop.f32.mrf.mxu0
    %321 = vdwg.mxu0
    %v322 = vmax.f32 %v319, 0.0
    %v323 = vpack.c.bf16 %v322, %v322
    %v324 = vld [vmem:[#allocation14] sm:$0xf]
    %v325 = vld [vmem:[%s8] sm:$0xff]
    %327 = vset.pattern.permute.xlu0 0
    %328 = vperm.xlu0 %327, %v325
    %v329 = vpop.permute.xlu0 %328
    %vm331 = vcmask 64512
    %v333 = vsel %vm331, %v324, 0
    %v336 = vsel %vm255, %v323, 0
    %338 = vmatpush.bf16.msra.mxu0 0
    %339 = vmatpush.bf16.msra.mxu0 0
    %340 = vmatpush.bf16.msra.mxu0 0
    %341 = vmatpush.bf16.msra.mxu0 0
    %342 = vmatpush.bf16.msra.mxu0 0
    %343 = vmatpush.bf16.msra.mxu0 0
    %344 = vmatpush.bf16.msra.mxu0 0
    %345 = vmatpush.bf16.msra.mxu0 %v336
    %346 = vmatmul.bf16.gmra.mxu0 %v333
    %v347 = vpop.f32.mrf.mxu0
    %v348 = vadd.f32 %v329, %v347
    %v349 = vpop.f32.mrf.mxu0
    %350 = vdwg.mxu0
    %v351 = vmax.f32 %v348, 0.0
    %v352 = vpack.c.bf16 %v351, %v351
    %353 = vst.msk [vmem:[#allocation16] sm:$0xf] %vm118, %v352
    %355 = vrot.lane.b32.xlu0 %v352, 96
    %v356 = vpop.permute.xlu0 %355
    %s358 = scalar_lea.vmem [#allocation16], 4
    %359 = vst.msk [vmem:[%s358] sm:$0xf] %vm118, %v356
    // Predicated region
    $region62: #{forward.1} parent=1 // pred_check
      _
    $region63: #{forward.1} parent=1 // pred_check_branch
      %361 = sbr.rel (0) target = $region65
    $region64: #{forward.1} parent=1 // pred_region
      %363 = vsyncadd [#allocation7], 0
      %s364 = sshll.u32 [#allocation16], 4
      %s365 = int_to_ptr.vmem [resolvable:$true] %s364
      %s366 = sshll.u32 %s9, 4
      %s367 = int_to_ptr.hbm [resolvable:$true] %s366
      %372 = dma.vmem_to_hbm [thread:$0]  %s365, 128, %s367, [#allocation7], 64, 64, 4
    $region65: #{forward.1} parent=1 // pred_fallthru
      _
    // Predicated region
    $region66: #{forward.1} parent=1 // pred_check
      _
    $region67: #{forward.1} parent=1 // pred_check_branch
      %374 = sbr.rel (0) target = $region69
    $region68: #{forward.1} parent=1 // pred_region
      %376 = dma.done [#allocation7], 128
    $region69: #{forward.1} parent=1 // pred_fallthru
      _
    %377 = vsyncpa [#allocation6], 1
    %378 = vsyncpa [#allocation9], 1
    %379 = vsyncpa [#allocation12], 1
    %380 = vsyncpa [#allocation15], 1
    %381 = vsyncpa [#allocation7], 1

</llo_original>
